<compile_context>
chip_gen: v7x
topology: tpu7x:2x2x1
jax: 0.10.0
libtpu: 0.0.40
codegen_flags: <defaults>
</compile_context>

<pallas_src>
import functools

import numpy as np
import jax
import jax.numpy as jnp
from jax.experimental import pallas as pl
from jax.experimental.pallas import tpu as pltpu


# ----------------------------- sizing helpers -----------------------------

def _vmem_capacity_bytes():
    """Physical VMEM of the local TPU generation (conservative fallback)."""
    try:
        return int(pltpu.get_tpu_info().vmem_capacity_bytes)
    except Exception:
        return 64 * 1024 * 1024          # assume the smallest (v7x per-TC)


def _pick_channel_block(bc, h, w, itemsize, target_bytes):
    """Channels per grid step: ~target_bytes tile, >=2 grid points, divides bc."""
    per_img = max(1, h * w * itemsize)
    cb = max(1, min(bc, target_bytes // per_img))
    if bc >= 2:
        cb = min(cb, max(1, bc // 2))    # >= 2 parallel grid points (v7x: 2 TCs)
    while bc % cb:                       # exact tiling -> no masked partial blocks
        cb -= 1
    return cb


# ----------------------------- Pallas kernel -----------------------------

def _highpass_kernel(x_ref, o_ref, *, inv_w_hpf):
    """3x3 depthwise high-pass on a block of `cb` whole (H, W) channel images.

    x_ref, o_ref: (cb, H, W).  Zero padding of the stencil is formed in-register
    (zero row / zero column), so no padded HBM copy and no halo DMA is needed.
    """
    x = x_ref[...].astype(jnp.float32)                       # (cb, H, W)
    cb, h, w = x.shape

    # vertical 3-tap sum with zero padding at the image top/bottom
    zrow = jnp.zeros((cb, 1, w), jnp.float32)
    up = jnp.concatenate([zrow, x[:, : h - 1, :]], axis=1)   # x[i-1], 0 at i=0
    down = jnp.concatenate([x[:, 1:, :], zrow], axis=1)      # x[i+1], 0 at i=H-1
    vsum = x + up + down                                     # (cb, H, W)

    # horizontal 3-tap sum with zero padding at the image left/right
    zcol = jnp.zeros((cb, h, 1), jnp.float32)
    left = jnp.concatenate([zcol, vsum[:, :, : w - 1]], axis=2)
    right = jnp.concatenate([vsum[:, :, 1:], zcol], axis=2)
    box = vsum + left + right                                # 3x3 box sum (incl. center)

    # (8*center - 8 neighbors) / w_hpf  ==  (9*center - box) / w_hpf
    o_ref[...] = ((9.0 * x - box) * inv_w_hpf).astype(o_ref.dtype)


# ----------------------------- wrapper -----------------------------

def highpass(x_nchw, w_hpf):
    """Equivalent of HighPass.forward: F.conv2d(x, filt, padding=1, groups=C). NCHW in/out."""
    b, c, h, w = x_nchw.shape
    bc = b * c
    x = x_nchw.reshape(bc, h, w)                 # free reshape: channels independent

    cap = _vmem_capacity_bytes()
    big_vmem = cap >= 96 * 1024 * 1024           # v5e/v6e (128 MiB) vs v7x (64 MiB)
    target_bytes = (2 << 20) if big_vmem else (1 << 20)
    vmem_limit = (48 << 20) if big_vmem else (32 << 20)

    cb = _pick_channel_block(bc, h, w, x.dtype.itemsize, target_bytes)
    grid = (bc // cb,)
    # TODO(synk): if a single (H, W) image ever exceeds ~target_bytes (e.g. >1k x 1k
    # f32), add a row-tile grid axis with an in-kernel halo instead of cb=1 tiles.

    kernel = functools.partial(_highpass_kernel, inv_w_hpf=float(1.0 / w_hpf))
    out = pl.pallas_call(
        kernel,
        grid=grid,
        in_specs=[pl.BlockSpec((cb, h, w), lambda i: (i, 0, 0))],
        out_specs=pl.BlockSpec((cb, h, w), lambda i: (i, 0, 0)),
        out_shape=jax.ShapeDtypeStruct((bc, h, w), x.dtype),
        compiler_params=pltpu.CompilerParams(
            dimension_semantics=("parallel",),
            vmem_limit_bytes=vmem_limit,
        ),
        cost_estimate=pl.CostEstimate(
            flops=9 * bc * h * w,
            bytes_accessed=2 * bc * h * w * x.dtype.itemsize,
            transcendentals=0,
        ),
    )(x)
    return out.reshape(b, c, h, w)


# ------------- pure-JAX reference (mirrors the PyTorch module exactly) -------------

def highpass_reference(x_nchw, w_hpf):
    c = x_nchw.shape[1]
    base = jnp.array([[-1.0, -1.0, -1.0],
                      [-1.0, 8.0, -1.0],
                      [-1.0, -1.0, -1.0]], jnp.float32) / w_hpf
    filt = jnp.tile(base[None, None], (c, 1, 1, 1))          # (C, 1, 3, 3) OIHW, groups=C
    return jax.lax.conv_general_dilated(
        x_nchw, filt, window_strides=(1, 1), padding=[(1, 1), (1, 1)],
        dimension_numbers=("NCHW", "OIHW", "NCHW"),
        feature_group_count=c,
        precision=jax.lax.Precision.HIGHEST)


if __name__ == "__main__":
    key = jax.random.PRNGKey(0)
    batch, channels, size = 2, 4, 16
    w_hpf = 1.0
    x = jax.random.normal(key, (batch, channels, size, size), jnp.float32)   # PyTorch NCHW

    out = jax.block_until_ready(highpass(x, w_hpf))
    assert out.shape == x.shape, out.shape

    ref = jax.block_until_ready(highpass_reference(x, w_hpf))
    np.testing.assert_allclose(np.asarray(out), np.asarray(ref), rtol=1e-4, atol=1e-4)

    print("KERNEL_OK")
</pallas_src>

<mosaic_0001>
module attributes {stable_mosaic.version = 11 : i64} {
  func.func @_highpass_kernel(%arg0: i32, %arg1: memref<4x16x16xf32, #tpu.memory_space<vmem>>, %arg2: memref<4x16x16xf32, #tpu.memory_space<vmem>>) attributes {dimension_semantics = [#tpu.dimension_semantics<parallel>], iteration_bounds = array<i64: 2>, scalar_prefetch = 0 : i64, scratch_operands = 0 : i64, tpu.core_type = #tpu.core_type<tc>, window_params = [{transform_indices = @transform_0, window_bounds = array<i64: 4, 16, 16>}, {transform_indices = @transform_1, window_bounds = array<i64: 4, 16, 16>}]} {
    %c0 = arith.constant 0 : index
    %c0_0 = arith.constant 0 : index
    %c0_1 = arith.constant 0 : index
    %0 = vector.load %arg1[%c0, %c0_0, %c0_1] : memref<4x16x16xf32, #tpu.memory_space<vmem>>, vector<4x16x16xf32>
    %cst = arith.constant 0.000000e+00 : f32
    %1 = vector.broadcast %cst : f32 to vector<4x1x16xf32>
    %2 = vector.extract_strided_slice %0 {offsets = [0, 0, 0], sizes = [4, 15, 16], strides = [1, 1, 1]} : vector<4x16x16xf32> to vector<4x15x16xf32>
    %3 = tpu.concatenate %1, %2 in 1 : vector<4x1x16xf32>, vector<4x15x16xf32> -> vector<4x16x16xf32>
    %4 = vector.extract_strided_slice %0 {offsets = [0, 1, 0], sizes = [4, 15, 16], strides = [1, 1, 1]} : vector<4x16x16xf32> to vector<4x15x16xf32>
    %5 = tpu.concatenate %4, %1 in 1 : vector<4x15x16xf32>, vector<4x1x16xf32> -> vector<4x16x16xf32>
    %6 = arith.addf %0, %3 : vector<4x16x16xf32>
    %7 = arith.addf %6, %5 : vector<4x16x16xf32>
    %cst_2 = arith.constant 0.000000e+00 : f32
    %8 = vector.broadcast %cst_2 : f32 to vector<4x16x1xf32>
    %9 = vector.extract_strided_slice %7 {offsets = [0, 0, 0], sizes = [4, 16, 15], strides = [1, 1, 1]} : vector<4x16x16xf32> to vector<4x16x15xf32>
    %10 = tpu.concatenate %8, %9 in 2 : vector<4x16x1xf32>, vector<4x16x15xf32> -> vector<4x16x16xf32>
    %11 = vector.extract_strided_slice %7 {offsets = [0, 0, 1], sizes = [4, 16, 15], strides = [1, 1, 1]} : vector<4x16x16xf32> to vector<4x16x15xf32>
    %12 = tpu.concatenate %11, %8 in 2 : vector<4x16x15xf32>, vector<4x16x1xf32> -> vector<4x16x16xf32>
    %13 = arith.addf %7, %10 : vector<4x16x16xf32>
    %14 = arith.addf %13, %12 : vector<4x16x16xf32>
    %cst_3 = arith.constant 9.000000e+00 : f32
    %15 = vector.broadcast %cst_3 : f32 to vector<4x16x16xf32>
    %16 = arith.mulf %15, %0 : vector<4x16x16xf32>
    %17 = arith.subf %16, %14 : vector<4x16x16xf32>
    %cst_4 = arith.constant 1.000000e+00 : f32
    %18 = vector.broadcast %cst_4 : f32 to vector<4x16x16xf32>
    %19 = arith.mulf %17, %18 : vector<4x16x16xf32>
    %c0_5 = arith.constant 0 : index
    %c0_6 = arith.constant 0 : index
    %c0_7 = arith.constant 0 : index
    %20 = vector.load %arg2[%c0_5, %c0_6, %c0_7] : memref<4x16x16xf32, #tpu.memory_space<vmem>>, vector<4x16x16xf32>
    tpu.vector_store %arg2[%c0_5, %c0_6, %c0_7], %19 {strides = array<i32>} : memref<4x16x16xf32, #tpu.memory_space<vmem>>, vector<4x16x16xf32>,
    return
  }
  func.func @transform_0(%arg0: i32) -> (i32, i32, i32) {
    %c0_i32 = arith.constant 0 : i32
    %c0_i32_0 = arith.constant 0 : i32
    %c0_i32_1 = arith.constant 0 : i32
    return %arg0, %c0_i32, %c0_i32_0 : i32, i32, i32
  }
  func.func @transform_1(%arg0: i32) -> (i32, i32, i32) {
    %c0_i32 = arith.constant 0 : i32
    %c0_i32_0 = arith.constant 0 : i32
    %c0_i32_1 = arith.constant 0 : i32
    return %arg0, %c0_i32, %c0_i32_0 : i32, i32, i32
  }
}

</mosaic_0001>

<llo_original>
// kernel: tpu_custom_call.1
$region0: #{tpu_custom_call.1}
  #allocation0 [shape = 'u32[]', space=smem, size = 0x4, offset = 0x4, fixed_abs, tag = 'smem constant byte address 0x4 - core index']
  #allocation1 [shape = 'u32[144,128]{1,0:T(1,128)}', space=vmem, size = 0x12000, scoped, tag = 'internal scratch']
  %s0 = inlined_call_operand.hbm [shape: f32[8,16,16], index: 0, kind: input, shape index: {}]
  %s1 = inlined_call_operand.hbm [shape: f32[8,16,16], index: 1, kind: output, shape index: {}]
  %s2 = sld [smem:[#allocation0]]
  $region41: #{tpu_custom_call.1} parent=0
    _
  %s4 = ssub.s32 1, %s2
  %s5 = scalar_select 0, %s4, %s2
  $region1: #{tpu_custom_call.1} parent=0
    #allocation2 [shape = 'u8[65536]{0}', space=vmem, size = 0x10000, scoped, tag = 'input window, operand 0']
    #allocation3 [shape = 's32[2]{0}', space=sflag, size = 0x8, scoped, tag = 'scoped memory for tpu_custom_call.1']
    #allocation4 [shape = 's32[2]{0}', space=sflag, size = 0x8, scoped, tag = 'scoped memory for tpu_custom_call.1']
    #allocation5 [shape = 'u8[65536]{0}', space=vmem, size = 0x10000, scoped, tag = 'output window, operand 0']
    %6 = vsyncpa [#allocation3], 0
    %s7 = scalar_lea.sflag [#allocation3], 1
    %8 = vsyncpa %s7, 0
    %9 = vsyncpa [#allocation4], 0
    %s10 = scalar_lea.sflag [#allocation4], 1
    %11 = vsyncpa %s10, 0
    loop: start=0, step=1, limit=4
    $region2: #{tpu_custom_call.1} parent=1 // loop_pre_header
      _
    $region3: #{tpu_custom_call.1} parent=1 // loop_header
      %s13 = sphi 0, %s17
      %p14 = scmp.ge.s32.totalorder %s13, 4
      %s23 = sphi 0, %s25
      %s26 = sphi 0, %s23
      %s27 = sphi 0, %s26
      %s43 = sphi 0, %s27
      %s49 = sphi 0, %s51
      %s52 = sphi 0, %s49
      %s53 = sphi 0, %s52
      %s69 = sphi 0, %s53
    $region4: #{tpu_custom_call.1} parent=1 // loop_header_branch
      %16 = sbr.rel (%p14) target = $region8
    $region5: #{tpu_custom_call.1} parent=1 // loop_body
      %s18 = ssub.s32 %s13, 1
      %s19 = ssub.s32 %s13, 2
      %s20 = sadd.s32 %s13, 1
      %s21 = ssub.s32 %s13, %s20
      %p22 = scmp.eq.s32.totalorder %s21, 0
      %s24 = sadd.s32 %s23, 1
      %s25 = scalar_select %p22, %s23, %s24
      %p28 = pneg %p22
      %p29 = scmp.eq.s32.totalorder %s13, 1
      %p30 = por %p28, %p29
      %p31 = scmp.ne.s32.totalorder %s23, %s26
      %p32 = scmp.eq.s32.totalorder %s13, 0
      %p33 = por %p31, %p32
      %p34 = scmp.ne.s32.totalorder %s23, %s26
      %p35 = scmp.eq.s32.totalorder %s18, 1
      %p36 = por %p34, %p35
      %p37 = scmp.ne.s32.totalorder %s26, %s27
      %p38 = scmp.eq.s32.totalorder %s18, 0
      %p39 = por %p37, %p38
      %p40 = scmp.ne.s32.totalorder %s26, %s27
      %p41 = scmp.eq.s32.totalorder %s19, 1
      %p42 = por %p40, %p41
      %p44 = scmp.ne.s32.totalorder %s27, %s43
      %p45 = scmp.eq.s32.totalorder %s19, 0
      %p46 = por %p44, %p45
      %s47 = ssub.s32 %s13, %s20
      %p48 = scmp.eq.s32.totalorder %s47, 0
      %s50 = sadd.s32 %s49, 1
      %s51 = scalar_select %p48, %s49, %s50
      %p54 = pneg %p48
      %p55 = scmp.eq.s32.totalorder %s13, 1
      %p56 = por %p54, %p55
      %p57 = scmp.ne.s32.totalorder %s49, %s52
      %p58 = scmp.eq.s32.totalorder %s13, 0
      %p59 = por %p57, %p58
      %p60 = scmp.ne.s32.totalorder %s49, %s52
      %p61 = scmp.eq.s32.totalorder %s18, 1
      %p62 = por %p60, %p61
      %p63 = scmp.ne.s32.totalorder %s52, %s53
      %p64 = scmp.eq.s32.totalorder %s18, 0
      %p65 = por %p63, %p64
      %p66 = scmp.ne.s32.totalorder %s52, %s53
      %p67 = scmp.eq.s32.totalorder %s19, 1
      %p68 = por %p66, %p67
      %p70 = scmp.ne.s32.totalorder %s53, %s69
      %p71 = scmp.eq.s32.totalorder %s19, 0
      %p72 = por %p70, %p71
      %p73 = scmp.le.s32.totalorder 1, %s13
      %p74 = scmp.lt.s32.totalorder %s13, 3
      %p75 = pnand %p73, %p74
      %p76 = pneg %p75
      // Predicated region
      $region9: #{tpu_custom_call.1} parent=5 // pred_check
        _
      $region10: #{tpu_custom_call.1} parent=5 // pred_check_branch
        %78 = sbr.rel (%p75) target = $region12
      $region11: #{tpu_custom_call.1} parent=5 // pred_region
        %s79 = ssub.s32 %s13, 1
      $region12: #{tpu_custom_call.1} parent=5 // pred_fallthru
        _
      %p80 = scmp.lt.s32.totalorder %s13, 2
      // Predicated region
      $region13: #{tpu_custom_call.1} parent=5 // pred_check
        %p81 = pneg %p80
      $region14: #{tpu_custom_call.1} parent=5 // pred_check_branch
        %83 = sbr.rel (%p81) target = $region16
      $region15: #{tpu_custom_call.1} parent=5 // pred_region
        // Predicated region
        $region17: #{tpu_custom_call.1} parent=15 // pred_check
          %p84 = pneg %p33
        $region18: #{tpu_custom_call.1} parent=15 // pred_check_branch
          %86 = sbr.rel (%p84) target = $region20
        $region19: #{tpu_custom_call.1} parent=15 // pred_region
          %s87 = sand.u32 %s23, 1
          %s88 = scalar_lea.sflag [#allocation3], %s87
          %s89 = sand.u32 %s23, 1
          %s90 = smul.addr %s89, 64
          %s91 = scalar_lea.vmem [#allocation2], %s90
          %s92 = smul.u32 4, %s13
          %s94 = ssub.s32 1024, 1024
          %95 = vsyncadd %s88, %s94
          %s96 = smul.addr %s92, 2
          %s97 = smul.addr %s96, 128
          %s98 = scalar_lea.hbm %s0, %s97
          %s99 = sshll.u32 %s91, 4
          %s100 = int_to_ptr.vmem [resolvable:$true] %s99
          %105 = dma.hbm_to_vmem [thread:$0]  %s98, 1024, %s100, %s88, 128, 128, 8
        $region20: #{tpu_custom_call.1} parent=15 // pred_fallthru
          _
      $region16: #{tpu_custom_call.1} parent=5 // pred_fallthru
        _
      %p106 = scmp.le.s32.totalorder 1, %s13
      %p107 = scmp.lt.s32.totalorder %s13, 3
      %p108 = pnand %p106, %p107
      %p109 = pneg %p108
      // Predicated region
      $region21: #{tpu_custom_call.1} parent=5 // pred_check
        _
      $region22: #{tpu_custom_call.1} parent=5 // pred_check_branch
        %111 = sbr.rel (%p108) target = $region24
      $region23: #{tpu_custom_call.1} parent=5 // pred_region
        %s112 = ssub.s32 %s13, 1
        %s113 = sand.u32 %s26, 1
        %s114 = scalar_lea.sflag [#allocation3], %s113
        %s115 = sand.u32 %s26, 1
        %s116 = smul.addr %s115, 64
        %s117 = scalar_lea.vmem [#allocation2], %s116
        // Predicated region
        $region25: #{tpu_custom_call.1} parent=23 // pred_check
          %p118 = pneg %p39
        $region26: #{tpu_custom_call.1} parent=23 // pred_check_branch
          %120 = sbr.rel (%p118) target = $region28
        $region27: #{tpu_custom_call.1} parent=23 // pred_region
          %121 = dma.done %s114, 1024
        $region28: #{tpu_custom_call.1} parent=23 // pred_fallthru
          _
        %s122 = sand.u32 %s26, 1
        %s123 = scalar_lea.sflag [#allocation3], %s122
        %s124 = sand.u32 %s26, 1
        %s125 = smul.addr %s124, 64
        %s126 = scalar_lea.vmem [#allocation2], %s125
        %p127 = pneg %p39
        %p128 = pneg %p36
        %p129 = pneg %p65
        %p130 = pneg %p62
        %s131 = sand.u32 %s52, 1
        %s132 = scalar_lea.sflag [#allocation4], %s131
        %s133 = sand.u32 %s52, 1
        %s134 = smul.addr %s133, 64
        %s135 = scalar_lea.vmem [#allocation5], %s134
        %s136 = smul.u32 4, %s18
        %s137 = smul.u32 4, %s18
        %v138 = vld [vmem:[%s117] sm:$0xff]
        %v139 = vld [vmem:[%s117 + $0x8] sm:$0xff]
        %v140 = vld [vmem:[%s117 + $0x10] sm:$0xff]
        %v141 = vld [vmem:[%s117 + $0x18] sm:$0xff]
        %v142 = vld [vmem:[%s117 + $0x20] sm:$0xff]
        %v143 = vld [vmem:[%s117 + $0x28] sm:$0xff]
        %v144 = vld [vmem:[%s117 + $0x30] sm:$0xff]
        %v145 = vld [vmem:[%s117 + $0x38] sm:$0xff]
        %vm154 = vcmask 1040384
        %v155 = vrot.slane %v138, 7
        %v156 = vrot.slane %v139, 7
        %v157 = vsel %vm154, %v155, %v156
        %v158 = vrot.slane %v140, 7
        %v159 = vrot.slane %v141, 7
        %v160 = vsel %vm154, %v158, %v159
        %v161 = vrot.slane %v142, 7
        %v162 = vrot.slane %v143, 7
        %v163 = vsel %vm154, %v161, %v162
        %v164 = vrot.slane %v144, 7
        %v165 = vrot.slane %v145, 7
        %v166 = vsel %vm154, %v164, %v165
        %v175 = vsel %vm154, 0.0, %v155
        %v176 = vsel %vm154, 0.0, %v158
        %v177 = vsel %vm154, 0.0, %v161
        %v178 = vsel %vm154, 0.0, %v164
        %vm179 = vcmask 1046528
        %v180 = vrot.slane %v138, 1
        %v181 = vrot.slane %v139, 1
        %v182 = vsel %vm179, %v180, %v181
        %v183 = vrot.slane %v140, 1
        %v184 = vrot.slane %v141, 1
        %v185 = vsel %vm179, %v183, %v184
        %v186 = vrot.slane %v142, 1
        %v187 = vrot.slane %v143, 1
        %v188 = vsel %vm179, %v186, %v187
        %v189 = vrot.slane %v144, 1
        %v190 = vrot.slane %v145, 1
        %v191 = vsel %vm179, %v189, %v190
        %v200 = vsel %vm179, %v181, 0.0
        %v201 = vsel %vm179, %v184, 0.0
        %v202 = vsel %vm179, %v187, 0.0
        %v203 = vsel %vm179, %v190, 0.0
        %v204 = vadd.f32 %v138, %v175
        %v205 = vadd.f32 %v139, %v157
        %v206 = vadd.f32 %v140, %v176
        %v207 = vadd.f32 %v141, %v160
        %v208 = vadd.f32 %v142, %v177
        %v209 = vadd.f32 %v143, %v163
        %v210 = vadd.f32 %v144, %v178
        %v211 = vadd.f32 %v145, %v166
        %v212 = vadd.f32 %v204, %v182
        %v213 = vadd.f32 %v205, %v200
        %v214 = vadd.f32 %v206, %v185
        %v215 = vadd.f32 %v207, %v201
        %v216 = vadd.f32 %v208, %v188
        %v217 = vadd.f32 %v209, %v202
        %v218 = vadd.f32 %v210, %v191
        %v219 = vadd.f32 %v211, %v203
        %228 = vrot.lane.b32.xlu0 %v212, 1
        %v229 = vpop.permute.xlu0 %228
        %230 = vrot.lane.b32.xlu0 %v213, 1
        %v231 = vpop.permute.xlu0 %230
        %232 = vrot.lane.b32.xlu0 %v214, 1
        %v233 = vpop.permute.xlu0 %232
        %234 = vrot.lane.b32.xlu0 %v215, 1
        %v235 = vpop.permute.xlu0 %234
        %236 = vrot.lane.b32.xlu0 %v216, 1
        %v237 = vpop.permute.xlu0 %236
        %238 = vrot.lane.b32.xlu0 %v217, 1
        %v239 = vpop.permute.xlu0 %238
        %240 = vrot.lane.b32.xlu0 %v218, 1
        %v241 = vpop.permute.xlu0 %240
        %242 = vrot.lane.b32.xlu0 %v219, 1
        %v243 = vpop.permute.xlu0 %242
        %vm252 = vcmask 7168
        %v253 = vsel %vm252, 0.0, %v229
        %v254 = vsel %vm252, 0.0, %v231
        %v255 = vsel %vm252, 0.0, %v233
        %v256 = vsel %vm252, 0.0, %v235
        %v257 = vsel %vm252, 0.0, %v237
        %v258 = vsel %vm252, 0.0, %v239
        %v259 = vsel %vm252, 0.0, %v241
        %v260 = vsel %vm252, 0.0, %v243
        %261 = vrot.lane.b32.xlu0 %v212, 127
        %v262 = vpop.permute.xlu0 %261
        %263 = vrot.lane.b32.xlu0 %v213, 127
        %v264 = vpop.permute.xlu0 %263
        %265 = vrot.lane.b32.xlu0 %v214, 127
        %v266 = vpop.permute.xlu0 %265
        %267 = vrot.lane.b32.xlu0 %v215, 127
        %v268 = vpop.permute.xlu0 %267
        %269 = vrot.lane.b32.xlu0 %v216, 127
        %v270 = vpop.permute.xlu0 %269
        %271 = vrot.lane.b32.xlu0 %v217, 127
        %v272 = vpop.permute.xlu0 %271
        %273 = vrot.lane.b32.xlu0 %v218, 127
        %v274 = vpop.permute.xlu0 %273
        %275 = vrot.lane.b32.xlu0 %v219, 127
        %v276 = vpop.permute.xlu0 %275
        %vm285 = vcmask 121856
        %v286 = vsel %vm285, %v262, 0.0
        %v287 = vsel %vm285, %v264, 0.0
        %v288 = vsel %vm285, %v266, 0.0
        %v289 = vsel %vm285, %v268, 0.0
        %v290 = vsel %vm285, %v270, 0.0
        %v291 = vsel %vm285, %v272, 0.0
        %v292 = vsel %vm285, %v274, 0.0
        %v293 = vsel %vm285, %v276, 0.0
        %v294 = vadd.f32 %v212, %v253
        %v295 = vadd.f32 %v213, %v254
        %v296 = vadd.f32 %v214, %v255
        %v297 = vadd.f32 %v215, %v256
        %v298 = vadd.f32 %v216, %v257
        %v299 = vadd.f32 %v217, %v258
        %v300 = vadd.f32 %v218, %v259
        %v301 = vadd.f32 %v219, %v260
        %v302 = vadd.f32 %v294, %v286
        %v303 = vadd.f32 %v295, %v287
        %v304 = vadd.f32 %v296, %v288
        %v305 = vadd.f32 %v297, %v289
        %v306 = vadd.f32 %v298, %v290
        %v307 = vadd.f32 %v299, %v291
        %v308 = vadd.f32 %v300, %v292
        %v309 = vadd.f32 %v301, %v293
        %v310 = vmul.f32 %v138, 9.0
        %v311 = vmul.f32 %v139, 9.0
        %v312 = vmul.f32 %v140, 9.0
        %v313 = vmul.f32 %v141, 9.0
        %v314 = vmul.f32 %v142, 9.0
        %v315 = vmul.f32 %v143, 9.0
        %v316 = vmul.f32 %v144, 9.0
        %v317 = vmul.f32 %v145, 9.0
        %v318 = vsub.f32 %v310, %v302
        %v319 = vsub.f32 %v311, %v303
        %v320 = vsub.f32 %v312, %v304
        %v321 = vsub.f32 %v313, %v305
        %v322 = vsub.f32 %v314, %v306
        %v323 = vsub.f32 %v315, %v307
        %v324 = vsub.f32 %v316, %v308
        %v325 = vsub.f32 %v317, %v309
        %vm326 = vcmask 130048
        %327 = vst.msk [vmem:[%s135] sm:$0xff] %vm326, %v318
        %328 = vst.msk [vmem:[%s135 + $0x8] sm:$0xff] %vm326, %v319
        %329 = vst.msk [vmem:[%s135 + $0x10] sm:$0xff] %vm326, %v320
        %330 = vst.msk [vmem:[%s135 + $0x18] sm:$0xff] %vm326, %v321
        %331 = vst.msk [vmem:[%s135 + $0x20] sm:$0xff] %vm326, %v322
        %332 = vst.msk [vmem:[%s135 + $0x28] sm:$0xff] %vm326, %v323
        %333 = vst.msk [vmem:[%s135 + $0x30] sm:$0xff] %vm326, %v324
        %334 = vst.msk [vmem:[%s135 + $0x38] sm:$0xff] %vm326, %v325
        %s335 = sand.u32 %s52, 1
        %s336 = scalar_lea.sflag [#allocation4], %s335
        %s337 = sand.u32 %s52, 1
        %s338 = smul.addr %s337, 64
        %s339 = scalar_lea.vmem [#allocation5], %s338
        // Predicated region
        $region29: #{tpu_custom_call.1} parent=23 // pred_check
          %p340 = pneg %p62
        $region30: #{tpu_custom_call.1} parent=23 // pred_check_branch
          %342 = sbr.rel (%p340) target = $region32
        $region31: #{tpu_custom_call.1} parent=23 // pred_region
          %s343 = smul.u32 4, %s18
          %s345 = ssub.s32 1024, 1024
          %346 = vsyncadd %s336, %s345
          %s347 = smul.addr %s343, 2
          %s348 = smul.addr %s347, 128
          %s349 = scalar_lea.hbm %s1, %s348
          %s350 = sshll.u32 %s339, 4
          %s351 = int_to_ptr.vmem [resolvable:$true] %s350
          %356 = dma.vmem_to_hbm [thread:$0]  %s351, 1024, %s349, %s336, 128, 128, 8
        $region32: #{tpu_custom_call.1} parent=23 // pred_fallthru
          _
      $region24: #{tpu_custom_call.1} parent=5 // pred_fallthru
        _
      %p357 = scmp.le.s32.totalorder 2, %s13
      // Predicated region
      $region33: #{tpu_custom_call.1} parent=5 // pred_check
        %p358 = pneg %p357
      $region34: #{tpu_custom_call.1} parent=5 // pred_check_branch
        %360 = sbr.rel (%p358) target = $region36
      $region35: #{tpu_custom_call.1} parent=5 // pred_region
        %s361 = ssub.s32 %s13, 2
        // Predicated region
        $region37: #{tpu_custom_call.1} parent=35 // pred_check
          %p362 = pneg %p68
        $region38: #{tpu_custom_call.1} parent=35 // pred_check_branch
          %364 = sbr.rel (%p362) target = $region40
        $region39: #{tpu_custom_call.1} parent=35 // pred_region
          %s365 = sand.u32 %s53, 1
          %s366 = scalar_lea.sflag [#allocation4], %s365
          %s367 = sand.u32 %s53, 1
          %s368 = smul.addr %s367, 64
          %s369 = scalar_lea.vmem [#allocation5], %s368
          %370 = dma.done %s366, 1024
        $region40: #{tpu_custom_call.1} parent=35 // pred_fallthru
          _
      $region36: #{tpu_custom_call.1} parent=5 // pred_fallthru
        _
    $region6: #{tpu_custom_call.1} parent=1 // loop_footer
      %s17 = sadd.s32 1, %s13
    $region7: #{tpu_custom_call.1} parent=1 // loop_footer_branch
      %12 = sbr.rel target = $region3
    $region8: #{tpu_custom_call.1} parent=1 // loop_exit
      _
    %371 = vsyncpa [#allocation3], 1
    %s372 = scalar_lea.sflag [#allocation3], 1
    %373 = vsyncpa %s372, 1
    %374 = vsyncpa [#allocation4], 1
    %s375 = scalar_lea.sflag [#allocation4], 1
    %376 = vsyncpa %s375, 1

</llo_original>
